<compile_context>
chip_gen: v7x
topology: tpu7x:2x2x1
jax: 0.10.0
libtpu: 0.0.40
codegen_flags: <defaults>
</compile_context>

<pallas_src>
import functools
import math

import jax
import jax.numpy as jnp
from jax.experimental import pallas as pl
from jax.experimental.pallas import tpu as pltpu


def _rmsn_kernel(x_ref, o_ref, *, inv_mean_dim: float, eps: float):
    # Upcast to f32 for the reduction (matches the PyTorch fp16 -> fp32 path;
    # for fp32 input this is a no-op).
    x = x_ref[...].astype(jnp.float32)
    # variance = sum(x^2, axis=-1, keepdims=True) / mean_dim
    # (multiply by precomputed 1/mean_dim instead of dividing; rsqrt -> EUP slot)
    variance = jnp.sum(x * x, axis=-1, keepdims=True) * inv_mean_dim
    y = x * jax.lax.rsqrt(variance + eps)
    o_ref[...] = y.astype(o_ref.dtype)


def _sublane_packing(dtype) -> int:
    # f32 -> 8 rows/vreg, bf16/f16 -> 16, int8/fp8 -> 32.
    itemsize = jnp.dtype(dtype).itemsize
    return max(8, 32 // max(itemsize, 1))


def _round_up(x: int, m: int) -> int:
    return ((x + m - 1) // m) * m


def _vmem_capacity_bytes() -> int:
    """Physical VMEM per TensorCore; conservative (v7x-sized) fallback."""
    try:
        return int(pltpu.get_tpu_info().vmem_capacity_bytes)
    except Exception:
        return 64 * 1024 * 1024


def rmsn(x: jax.Array, mean_dim: int, eps: float = 1e-5, *, row_tile: int | None = None) -> jax.Array:
    """RMSN forward. Sums x^2 over the last axis, divides by mean_dim;
    output dtype == input dtype (computation in f32)."""
    orig_shape = x.shape
    orig_dtype = x.dtype
    hidden = orig_shape[-1]
    rows = math.prod(orig_shape[:-1]) if len(orig_shape) > 1 else 1
    x2d = x.reshape(rows, hidden)

    in_bytes = jnp.dtype(orig_dtype).itemsize
    packing = _sublane_packing(orig_dtype)

    vmem_cap = _vmem_capacity_bytes()
    headroom = 16 * 1024 * 1024
    vmem_budget = max(32 * 1024 * 1024, vmem_cap - headroom)

    # Per-row VMEM footprint of one grid step: double-buffered input + output
    # blocks (2 * 2 * in_bytes) plus ~3 full-block f32 intermediates inside the
    # kernel (x upcast, x*x, y).
    per_row_vmem = hidden * (4 * in_bytes + 3 * 4)

    if row_tile is None:
        # Bytes-based sizing only (no fixed row cap): ~8 MiB input blocks on
        # 128-MiB-VMEM parts (v5e/v6e), ~4 MiB on 64-MiB-VMEM parts (v7x).
        if vmem_cap >= 96 * 1024 * 1024:
            target_block_bytes = 8 * 1024 * 1024
        else:
            target_block_bytes = 4 * 1024 * 1024
        row_tile = max(packing, target_block_bytes // max(hidden * in_bytes, 1))

    # Never let the block exceed what fits in VMEM (with headroom).
    max_rows_by_vmem = max(packing, vmem_budget // max(per_row_vmem, 1))
    row_tile = min(row_tile, max_rows_by_vmem)
    # Don't make the block much larger than the (packing-padded) row count,
    # and keep it a multiple of the sublane packing (>= 8).
    row_tile = min(row_tile, _round_up(rows, packing))
    row_tile = max(packing, (row_tile // packing) * packing)

    grid = (pl.cdiv(rows, row_tile),)

    # Generation-aware VMEM limit: what this block needs (+ margin), clamped to
    # physical capacity minus headroom for Mosaic internal scratch/semaphores.
    block_io_bytes = row_tile * hidden * in_bytes
    block_f32_bytes = row_tile * hidden * 4
    needed = 4 * block_io_bytes + 3 * block_f32_bytes
    vmem_limit = max(32 * 1024 * 1024, needed + 4 * 1024 * 1024)
    vmem_limit = min(vmem_limit, vmem_cap - headroom)
    vmem_limit = max(vmem_limit, 16 * 1024 * 1024)

    cost = pl.CostEstimate(
        flops=3 * rows * hidden,
        transcendentals=rows,
        bytes_accessed=2 * rows * hidden * in_bytes,
    )

    out2d = pl.pallas_call(
        functools.partial(_rmsn_kernel, inv_mean_dim=1.0 / float(mean_dim), eps=eps),
        out_shape=jax.ShapeDtypeStruct((rows, hidden), orig_dtype),
        grid_spec=pltpu.PrefetchScalarGridSpec(
            num_scalar_prefetch=0,
            grid=grid,
            in_specs=[pl.BlockSpec((row_tile, hidden), lambda i: (i, 0))],
            out_specs=pl.BlockSpec((row_tile, hidden), lambda i: (i, 0)),
        ),
        compiler_params=pltpu.CompilerParams(
            # Row axis is fully independent: shards across v7x's 2 TensorCores;
            # harmless no-op on single-TC v5e/v6e.
            dimension_semantics=("parallel",),
            vmem_limit_bytes=int(vmem_limit),
        ),
        cost_estimate=cost,
    )(x2d)

    return out2d.reshape(orig_shape)


def rmsn_reference(x: jax.Array, mean_dim: int, eps: float = 1e-5) -> jax.Array:
    input_dtype = x.dtype
    xf = x.astype(jnp.float32)
    variance = jnp.sum(xf * xf, axis=-1, keepdims=True) / mean_dim
    y = xf * jax.lax.rsqrt(variance + eps)
    return y.astype(input_dtype)


if __name__ == "__main__":
    # RMSN has no learnable parameters (only eps and mean_dim), nothing to init.
    key = jax.random.PRNGKey(0)
    k1, k2, k3 = jax.random.split(key, 3)

    # Test 1: small f32 shape consistent with the module spec (hidden=32).
    batch, seq, hidden = 2, 8, 32
    x1 = jax.random.normal(k1, (batch, seq, hidden), dtype=jnp.float32)
    out1 = jax.block_until_ready(rmsn(x1, mean_dim=hidden, eps=1e-5))
    ref1 = rmsn_reference(x1, mean_dim=hidden, eps=1e-5)
    assert out1.shape == x1.shape and out1.dtype == x1.dtype
    assert jnp.allclose(out1, ref1, atol=1e-5, rtol=1e-5)

    # Test 2: bf16 with lane-dense hidden (multiple of 128) and a row count
    # that is NOT a multiple of the tile, exercising the ragged cdiv path.
    b2, s2, h2 = 3, 7, 128
    x2 = jax.random.normal(k2, (b2, s2, h2), dtype=jnp.bfloat16)
    out2 = jax.block_until_ready(rmsn(x2, mean_dim=h2, eps=1e-5))
    ref2 = rmsn_reference(x2, mean_dim=h2, eps=1e-5)
    assert out2.shape == x2.shape and out2.dtype == x2.dtype
    assert jnp.allclose(out2.astype(jnp.float32), ref2.astype(jnp.float32), atol=2e-2, rtol=2e-2)

    # Test 3: explicit small row_tile to exercise a multi-step grid with the
    # new VMEM/tile sizing path (f32, lane-dense hidden).
    b3, s3, h3 = 4, 16, 256
    x3 = jax.random.normal(k3, (b3, s3, h3), dtype=jnp.float32)
    out3 = jax.block_until_ready(rmsn(x3, mean_dim=h3, eps=1e-5, row_tile=16))
    ref3 = rmsn_reference(x3, mean_dim=h3, eps=1e-5)
    assert out3.shape == x3.shape and out3.dtype == x3.dtype
    assert jnp.allclose(out3, ref3, atol=1e-5, rtol=1e-5)

    print("KERNEL_OK")
</pallas_src>

<mosaic_0001>
module attributes {stable_mosaic.version = 11 : i64} {
  func.func @_rmsn_kernel(%arg0: i32, %arg1: memref<16x32xf32, #tpu.memory_space<vmem>>, %arg2: memref<16x32xf32, #tpu.memory_space<vmem>>) attributes {dimension_semantics = [#tpu.dimension_semantics<parallel>], iteration_bounds = array<i64: 1>, scalar_prefetch = 0 : i64, scratch_operands = 0 : i64, tpu.core_type = #tpu.core_type<tc>, window_params = [{transform_indices = @transform_0, window_bounds = array<i64: 16, 32>}, {transform_indices = @transform_1, window_bounds = array<i64: 16, 32>}]} {
    %c0 = arith.constant 0 : index
    %c0_0 = arith.constant 0 : index
    %0 = vector.load %arg1[%c0, %c0_0] : memref<16x32xf32, #tpu.memory_space<vmem>>, vector<16x32xf32>
    %1 = arith.mulf %0, %0 : vector<16x32xf32>
    %cst = arith.constant dense<0.000000e+00> : vector<16xf32>
    %2 = vector.multi_reduction <add>, %1, %cst [1] : vector<16x32xf32> to vector<16xf32>
    %3 = vector.shape_cast %2 : vector<16xf32> to vector<16x1xf32>
    %cst_1 = arith.constant 3.125000e-02 : f32
    %4 = vector.broadcast %cst_1 : f32 to vector<16x1xf32>
    %5 = arith.mulf %3, %4 : vector<16x1xf32>
    %cst_2 = arith.constant 9.99999974E-6 : f32
    %6 = vector.broadcast %cst_2 : f32 to vector<16x1xf32>
    %7 = arith.addf %5, %6 : vector<16x1xf32>
    %8 = math.rsqrt %7 : vector<16x1xf32>
    %9 = vector.broadcast %8 : vector<16x1xf32> to vector<16x32xf32>
    %10 = arith.mulf %0, %9 : vector<16x32xf32>
    %c0_3 = arith.constant 0 : index
    %c0_4 = arith.constant 0 : index
    %11 = vector.load %arg2[%c0_3, %c0_4] : memref<16x32xf32, #tpu.memory_space<vmem>>, vector<16x32xf32>
    tpu.vector_store %arg2[%c0_3, %c0_4], %10 {strides = array<i32>} : memref<16x32xf32, #tpu.memory_space<vmem>>, vector<16x32xf32>,
    return
  }
  func.func @transform_0(%arg0: i32) -> (i32, i32) {
    %c0_i32 = arith.constant 0 : i32
    %c0_i32_0 = arith.constant 0 : i32
    return %arg0, %c0_i32 : i32, i32
  }
  func.func @transform_1(%arg0: i32) -> (i32, i32) {
    %c0_i32 = arith.constant 0 : i32
    %c0_i32_0 = arith.constant 0 : i32
    return %arg0, %c0_i32 : i32, i32
  }
}

</mosaic_0001>

<llo_original>
// kernel: tpu_custom_call.1
$region0: #{tpu_custom_call.1}
  #allocation0 [shape = 'u32[]', space=smem, size = 0x4, offset = 0x4, fixed_abs, tag = 'smem constant byte address 0x4 - core index']
  #allocation1 [shape = 'u32[144,128]{1,0:T(1,128)}', space=vmem, size = 0x12000, scoped, tag = 'internal scratch']
  %s0 = inlined_call_operand.hbm [shape: f32[16,32], index: 0, kind: input, shape index: {}]
  %s1 = inlined_call_operand.hbm [shape: f32[16,32], index: 1, kind: output, shape index: {}]
  %s2 = sld [smem:[#allocation0]]
  $region18: #{tpu_custom_call.1} parent=0
    _
  %s4 = ssub.s32 1, %s2
  %s5 = scalar_select 0, %s4, %s2
  $region1: #{tpu_custom_call.1} parent=0
    #allocation2 [shape = 'u8[8192]{0}', space=vmem, size = 0x2000, scoped, tag = 'input window, operand 0, single buffered']
    #allocation3 [shape = 's32[1]{0}', space=sflag, size = 0x4, scoped, tag = 'scoped memory for tpu_custom_call.1']
    #allocation4 [shape = 's32[1]{0}', space=sflag, size = 0x4, scoped, tag = 'scoped memory for tpu_custom_call.1']
    #allocation5 [shape = 'u8[8192]{0}', space=vmem, size = 0x2000, scoped, tag = 'output window, operand 0, single buffered']
    %6 = vsyncpa [#allocation3], 0
    %7 = vsyncpa [#allocation4], 0
    // Predicated region
    $region2: #{tpu_custom_call.1} parent=1 // pred_check
      _
    $region3: #{tpu_custom_call.1} parent=1 // pred_check_branch
      %9 = sbr.rel (0) target = $region5
    $region4: #{tpu_custom_call.1} parent=1 // pred_region
      %s11 = ssub.s32 256, 256
      %12 = vsyncadd [#allocation3], %s11
      %s13 = sshll.u32 [#allocation2], 4
      %s14 = int_to_ptr.vmem [resolvable:$true] %s13
      %19 = dma.hbm_to_vmem [thread:$0]  %s0, 256, %s14, [#allocation3], 128, 128, 8
    $region5: #{tpu_custom_call.1} parent=1 // pred_fallthru
      _
    // Predicated region
    $region6: #{tpu_custom_call.1} parent=1 // pred_check
      _
    $region7: #{tpu_custom_call.1} parent=1 // pred_check_branch
      %21 = sbr.rel (0) target = $region9
    $region8: #{tpu_custom_call.1} parent=1 // pred_region
      %22 = dma.done [#allocation3], 256
    $region9: #{tpu_custom_call.1} parent=1 // pred_fallthru
      _
    %v23 = vld [vmem:[#allocation2] sm:$0xff]
    %v24 = vld [vmem:[#allocation2 + $0x8] sm:$0xff]
    %v25 = vmul.f32 %v23, %v23
    %v26 = vmul.f32 %v24, %v24
    %vm27 = vcmask 261120
    %v28 = vsel %vm27, %v25, 0.0
    %29 = vadd.xlane.f32.xlu0 %v28
    %v30 = vpop.xlane.xlu0 %29
    %v31 = vsel %vm27, %v26, 0.0
    %32 = vadd.xlane.f32.xlu0 %v31
    %v33 = vpop.xlane.xlu0 %32
    %v34 = vmul.f32 %v30, 0.03125
    %v35 = vmul.f32 %v33, 0.03125
    %v36 = vadd.f32 %v34, 1e-05
    %v37 = vadd.f32 %v35, 1e-05
    %v38 = vrsqrt.pop %v36
    %v39 = vrsqrt.pop %v37
    %v40 = vmul.f32 %v23, %v38
    %v41 = vmul.f32 %v24, %v39
    %42 = vst.msk [vmem:[#allocation5] sm:$0xff] %vm27, %v40
    %43 = vst.msk [vmem:[#allocation5 + $0x8] sm:$0xff] %vm27, %v41
    // Predicated region
    $region10: #{tpu_custom_call.1} parent=1 // pred_check
      _
    $region11: #{tpu_custom_call.1} parent=1 // pred_check_branch
      %45 = sbr.rel (0) target = $region13
    $region12: #{tpu_custom_call.1} parent=1 // pred_region
      %s47 = ssub.s32 256, 256
      %48 = vsyncadd [#allocation4], %s47
      %s49 = sshll.u32 [#allocation5], 4
      %s50 = int_to_ptr.vmem [resolvable:$true] %s49
      %55 = dma.vmem_to_hbm [thread:$0]  %s50, 256, %s1, [#allocation4], 128, 128, 8
    $region13: #{tpu_custom_call.1} parent=1 // pred_fallthru
      _
    // Predicated region
    $region14: #{tpu_custom_call.1} parent=1 // pred_check
      _
    $region15: #{tpu_custom_call.1} parent=1 // pred_check_branch
      %57 = sbr.rel (0) target = $region17
    $region16: #{tpu_custom_call.1} parent=1 // pred_region
      %58 = dma.done [#allocation4], 256
    $region17: #{tpu_custom_call.1} parent=1 // pred_fallthru
      _
    %59 = vsyncpa [#allocation3], 1
    %60 = vsyncpa [#allocation4], 1

</llo_original>
